<compile_context>
chip_gen: v5e
topology: v5e:2x2
jax: 0.10.0
libtpu: 0.0.40
codegen_flags: <defaults>
</compile_context>

<pallas_src>
import functools

import numpy as np
import jax
import jax.numpy as jnp
from jax import lax
from jax.experimental import pallas as pl
from jax.experimental.pallas import tpu as pltpu

EPS = 1e-5  # RevIN default eps


# ----------------------------------------------------------------------------- kernel
def _revin_hp_kernel(x_ref, a_inv_ref, w_ref, b_ref, res_ref, g_ref, *, bf16_dot):
    # x_ref: (L, TN) in the caller's native dtype; cast once in VMEM.
    xb = x_ref[...].astype(jnp.float32)

    # RevIN 'norm': mean / biased variance over time (sublane reduction),
    # eps inside the sqrt; affine weight folded into the rsqrt scale (1 fewer
    # full-slab VPU multiply).
    mean = jnp.mean(xb, axis=0, keepdims=True)                  # (1, TN)
    centered = xb - mean
    var = jnp.mean(centered * centered, axis=0, keepdims=True)  # (1, TN)
    scale = w_ref[...] * lax.rsqrt(var + EPS)                   # (1, TN), EUP rsqrt
    xn = centered * scale + b_ref[...]

    # Hodrick-Prescott filter: g = A_inv @ xn ; res = xn - g.  TN is lane-dense
    # (multiple of 128 or the full feature dim) -> unmasked stores, full MXU cols.
    a = a_inv_ref[...]
    if bf16_dot:
        # Large-L compute-bound regime only: bf16 MXU rate, f32 accumulation.
        g = jnp.dot(a.astype(jnp.bfloat16), xn.astype(jnp.bfloat16),
                    preferred_element_type=jnp.float32)
    else:
        g = jnp.dot(a, xn, preferred_element_type=jnp.float32)

    g_ref[...] = g.astype(g_ref.dtype)
    res_ref[...] = (xn - g).astype(res_ref.dtype)


# ------------------------------------------------------------------------ host helpers
def _d_matrix_np(n):
    # Same as the PyTorch D_matrix(N): (N-1, N) first-difference operator.
    d = np.zeros((n - 1, n), np.float64)
    d[:, 1:] += np.eye(n - 1)
    d[:, :-1] -= np.eye(n - 1)
    return d


def hp_inverse(L, lamb):
    """(I + lamb * D^T D)^-1, built once on the host in float64 (conditioning)."""
    d1 = _d_matrix_np(L)
    d2 = _d_matrix_np(L - 1)
    D = d2 @ d1                                  # (L-2, L)
    A = np.eye(L) + float(lamb) * (D.T @ D)
    return jnp.asarray(np.linalg.inv(A), dtype=jnp.float32)


def _vmem_capacity_bytes():
    try:
        return int(pltpu.get_tpu_info().vmem_capacity_bytes)
    except Exception:
        return 128 * 1024 * 1024  # v5e/v6e default; conservative for unknown parts


def _pick_lane_tile(L, n_cols, in_itemsize, out_itemsize, tile_budget):
    """Largest lane tile (multiple of 128) whose double-buffered working set fits
    the budget, clamped so the parallel grid keeps >= 2 steps when possible."""
    # per-lane bytes: input (2 bufs) + 2 outputs (2 bufs each) + w/b (2 bufs each)
    per_lane = 2 * L * in_itemsize + 4 * L * out_itemsize + 4 * 2 * 4
    avail = max(tile_budget - 2 * L * L * 4, per_lane * 128)
    tn = max(128, int(avail // per_lane) // 128 * 128)
    n_cols128 = pl.cdiv(n_cols, 128) * 128
    if n_cols128 >= 256:
        # keep at least 2 grid steps so both v7x TensorCores get work
        tn = min(tn, max(128, (n_cols128 // 2) // 128 * 128))
    return int(min(tn, n_cols128))


# ----------------------------------------------------------------------------- wrapper
def time_detector_decompose(x, a_inv, w, b, *, out_dtype=None, lane_tile=None,
                            bf16_dot=None, folded_outputs=False):
    """RevIN-norm + HP decomposition.  Returns (res, cyc), each (B, L, M) in out_dtype
    (default: x.dtype).  With folded_outputs=True returns (L, B*M) slabs instead and
    skips the output-side transposes (consumer fuses the layout change)."""
    B, L, M = x.shape
    out_dtype = jnp.dtype(out_dtype or x.dtype)
    a_inv = a_inv.astype(jnp.float32)
    if bf16_dot is None:
        bf16_dot = L >= 1024   # only in the compute-bound (large win_size) regime
    kernel = functools.partial(_revin_hp_kernel, bf16_dot=bf16_dot)

    cap = _vmem_capacity_bytes()
    in_itemsize = jnp.dtype(x.dtype).itemsize
    out_itemsize = out_dtype.itemsize

    w_row = w.astype(jnp.float32).reshape(1, M)
    b_row = b.astype(jnp.float32).reshape(1, M)

    def _pallas(grid, in_specs, out_specs, out_shapes, est, flops, bytes_acc, args):
        vmem_limit = int(min(0.85 * cap, max(2 * est, 16 * 2 ** 20)))
        return pl.pallas_call(
            kernel,
            out_shape=out_shapes,
            grid_spec=pltpu.PrefetchScalarGridSpec(
                num_scalar_prefetch=0, grid=grid,
                in_specs=in_specs, out_specs=out_specs),
            compiler_params=pltpu.CompilerParams(
                dimension_semantics=("parallel",),
                vmem_limit_bytes=vmem_limit),
            cost_estimate=pl.CostEstimate(
                flops=int(flops), bytes_accessed=int(bytes_acc), transcendentals=0),
        )(*args)

    def _a_inv_spec(index_map, single_buffer):
        if single_buffer:
            # A_inv has a constant block index -> never re-fetched; single buffer
            # saves L*L*4 bytes of VMEM (headroom for larger tiles on v7x).
            return pl.BlockSpec((L, L), index_map, pipeline_mode=pl.Buffered(1))
        return pl.BlockSpec((L, L), index_map)

    # ---- direct path: no fold/pad/unfold HBM passes when M is already lane-dense ----
    direct_ws = L * M * (2 * in_itemsize + 4 * out_itemsize) + 2 * L * L * 4
    if (not folded_outputs and lane_tile is None and M % 128 == 0
            and direct_ws <= int(0.4 * cap)):
        est = direct_ws + 4 * M * 4
        flops = 2 * L * L * M * B
        bytes_acc = B * L * M * (in_itemsize + 2 * out_itemsize) + L * L * 4
        out_shapes = (jax.ShapeDtypeStruct((B, L, M), out_dtype),
                      jax.ShapeDtypeStruct((B, L, M), out_dtype))

        def _call(single_buffer):
            in_specs = [
                pl.BlockSpec((None, L, M), lambda bb: (bb, 0, 0)),   # x[b] slab
                _a_inv_spec(lambda bb: (0, 0), single_buffer),        # A_inv (shared)
                pl.BlockSpec((1, M), lambda bb: (0, 0)),              # RevIN weight
                pl.BlockSpec((1, M), lambda bb: (0, 0)),              # RevIN bias
            ]
            out_specs = [pl.BlockSpec((None, L, M), lambda bb: (bb, 0, 0))] * 2
            return _pallas((B,), in_specs, out_specs, out_shapes, est, flops, bytes_acc,
                           (x, a_inv, w_row, b_row))

        try:
            res, g = _call(True)
        except Exception:   # older jax: no pipeline_mode / Buffered(1) -> default buffering
            res, g = _call(False)
        return res, g

    # ---- folded path: (B, L, M) -> (L, B*M) so the lane axis is dense (M < 128) ----
    N = B * M
    tn = lane_tile or _pick_lane_tile(L, N, in_itemsize, out_itemsize, int(0.4 * cap))
    n_pad = pl.cdiv(N, tn) * tn
    grid = (n_pad // tn,)

    x_lw = jnp.transpose(x, (1, 0, 2)).reshape(L, N)
    w_cols = jnp.tile(w_row, (1, B))    # column j = b*M + m -> weight[m]
    b_cols = jnp.tile(b_row, (1, B))
    if n_pad != N:
        # zero columns + w=0/b=0 -> exactly-zero, NaN-free padded outputs
        x_lw = jnp.pad(x_lw, ((0, 0), (0, n_pad - N)))
        w_cols = jnp.pad(w_cols, ((0, 0), (0, n_pad - N)))
        b_cols = jnp.pad(b_cols, ((0, 0), (0, n_pad - N)))

    est = 2 * L * tn * in_itemsize + 4 * L * tn * out_itemsize + 2 * L * L * 4 + 4 * tn * 4
    flops = 2 * L * L * n_pad
    bytes_acc = L * n_pad * (in_itemsize + 2 * out_itemsize) + L * L * 4
    out_shapes = (jax.ShapeDtypeStruct((L, n_pad), out_dtype),
                  jax.ShapeDtypeStruct((L, n_pad), out_dtype))

    def _call(single_buffer):
        in_specs = [
            pl.BlockSpec((L, tn), lambda j: (0, j)),          # x column slab
            _a_inv_spec(lambda j: (0, 0), single_buffer),     # A_inv (shared)
            pl.BlockSpec((1, tn), lambda j: (0, j)),          # RevIN weight per column
            pl.BlockSpec((1, tn), lambda j: (0, j)),          # RevIN bias per column
        ]
        out_specs = [pl.BlockSpec((L, tn), lambda j: (0, j))] * 2
        return _pallas(grid, in_specs, out_specs, out_shapes, est, flops, bytes_acc,
                       (x_lw, a_inv, w_cols, b_cols))

    try:
        res_lw, g_lw = _call(True)
    except Exception:
        res_lw, g_lw = _call(False)

    if folded_outputs:
        return res_lw[:, :N], g_lw[:, :N]

    def unfold(y):
        return jnp.transpose(y[:, :N].reshape(L, B, M), (1, 0, 2))

    return unfold(res_lw), unfold(g_lw)


# ------------------------------------------------------------------------------- test
def _reference(x, a_inv, w, b):
    xf = x.astype(jnp.float32)
    mean = jnp.mean(xf, axis=1, keepdims=True)
    var = jnp.mean((xf - mean) ** 2, axis=1, keepdims=True)
    xn = (xf - mean) / jnp.sqrt(var + EPS) * w + b
    g = jnp.einsum("ij,bjm->bim", a_inv, xn, precision=jax.lax.Precision.HIGHEST)
    return xn - g, g


if __name__ == "__main__":
    key = jax.random.PRNGKey(0)
    lamb = 6400.0   # TimeDetector default hp_lamb

    # (B, L, M): small folded-path case (enc_in < 128) and small direct-path case.
    for (B, L, M) in [(2, 16, 8), (2, 16, 128)]:
        k1, k2, k3, key = jax.random.split(key, 4)
        x = jax.random.normal(k1, (B, L, M), jnp.float32)
        w = 1.0 + 0.1 * jax.random.normal(k2, (M,), jnp.float32)   # RevIN affine weight
        bias = 0.05 * jax.random.normal(k3, (M,), jnp.float32)     # RevIN affine bias
        a_inv = hp_inverse(L, lamb)

        res, cyc = time_detector_decompose(x, a_inv, w, bias)
        jax.block_until_ready((res, cyc))

        res_ref, cyc_ref = _reference(x, a_inv, w, bias)
        assert res.shape == (B, L, M) and cyc.shape == (B, L, M)
        assert jnp.allclose(res, res_ref, atol=1e-3, rtol=1e-3), ("res mismatch", B, L, M)
        assert jnp.allclose(cyc, cyc_ref, atol=1e-3, rtol=1e-3), ("cyc mismatch", B, L, M)

    print("KERNEL_OK")
</pallas_src>

<mosaic_0001>
module attributes {stable_mosaic.version = 11 : i64} {
  func.func @_revin_hp_kernel(%arg0: i32, %arg1: memref<16x128xf32, #tpu.memory_space<vmem>>, %arg2: memref<16x16xf32, #tpu.memory_space<vmem>>, %arg3: memref<1x128xf32, #tpu.memory_space<vmem>>, %arg4: memref<1x128xf32, #tpu.memory_space<vmem>>, %arg5: memref<16x128xf32, #tpu.memory_space<vmem>>, %arg6: memref<16x128xf32, #tpu.memory_space<vmem>>) attributes {dimension_semantics = [#tpu.dimension_semantics<parallel>], iteration_bounds = array<i64: 1>, scalar_prefetch = 0 : i64, scratch_operands = 0 : i64, tpu.core_type = #tpu.core_type<tc>, window_params = [{transform_indices = @transform_0, window_bounds = array<i64: 16, 128>}, {pipeline_mode = #tpu.pipeline_mode<synchronous>, transform_indices = @transform_1, window_bounds = array<i64: 16, 16>}, {transform_indices = @transform_2, window_bounds = array<i64: 1, 128>}, {transform_indices = @transform_3, window_bounds = array<i64: 1, 128>}, {transform_indices = @transform_4, window_bounds = array<i64: 16, 128>}, {transform_indices = @transform_5, window_bounds = array<i64: 16, 128>}]} {
    %c0 = arith.constant 0 : index
    %c0_0 = arith.constant 0 : index
    %0 = vector.load %arg1[%c0, %c0_0] : memref<16x128xf32, #tpu.memory_space<vmem>>, vector<16x128xf32>
    %cst = arith.constant dense<0.000000e+00> : vector<128xf32>
    %1 = vector.multi_reduction <add>, %0, %cst [0] : vector<16x128xf32> to vector<128xf32>
    %2 = vector.shape_cast %1 : vector<128xf32> to vector<1x128xf32>
    %cst_1 = arith.constant 1.600000e+01 : f32
    %3 = vector.broadcast %cst_1 : f32 to vector<1x128xf32>
    %4 = arith.divf %2, %3 : vector<1x128xf32>
    %5 = vector.broadcast %4 : vector<1x128xf32> to vector<16x128xf32>
    %6 = arith.subf %0, %5 : vector<16x128xf32>
    %7 = arith.mulf %6, %6 : vector<16x128xf32>
    %cst_2 = arith.constant dense<0.000000e+00> : vector<128xf32>
    %8 = vector.multi_reduction <add>, %7, %cst_2 [0] : vector<16x128xf32> to vector<128xf32>
    %9 = vector.shape_cast %8 : vector<128xf32> to vector<1x128xf32>
    %cst_3 = arith.constant 1.600000e+01 : f32
    %10 = vector.broadcast %cst_3 : f32 to vector<1x128xf32>
    %11 = arith.divf %9, %10 : vector<1x128xf32>
    %c0_4 = arith.constant 0 : index
    %c0_5 = arith.constant 0 : index
    %12 = vector.load %arg3[%c0_4, %c0_5] : memref<1x128xf32, #tpu.memory_space<vmem>>, vector<1x128xf32>
    %cst_6 = arith.constant 9.99999974E-6 : f32
    %13 = vector.broadcast %cst_6 : f32 to vector<1x128xf32>
    %14 = arith.addf %11, %13 : vector<1x128xf32>
    %15 = math.rsqrt %14 : vector<1x128xf32>
    %16 = arith.mulf %12, %15 : vector<1x128xf32>
    %17 = vector.broadcast %16 : vector<1x128xf32> to vector<16x128xf32>
    %18 = arith.mulf %6, %17 : vector<16x128xf32>
    %c0_7 = arith.constant 0 : index
    %c0_8 = arith.constant 0 : index
    %19 = vector.load %arg4[%c0_7, %c0_8] : memref<1x128xf32, #tpu.memory_space<vmem>>, vector<1x128xf32>
    %20 = vector.broadcast %19 : vector<1x128xf32> to vector<16x128xf32>
    %21 = arith.addf %18, %20 : vector<16x128xf32>
    %c0_9 = arith.constant 0 : index
    %c0_10 = arith.constant 0 : index
    %22 = vector.load %arg2[%c0_9, %c0_10] : memref<16x16xf32, #tpu.memory_space<vmem>>, vector<16x16xf32>
    %cst_11 = arith.constant dense<0.000000e+00> : vector<16x128xf32>
    %23 = tpu.matmul %22, %21, %cst_11 {dimension_numbers = #tpu.dot_dimension_numbers<[1], [0], [0], [1], [0, 0, 1, 1], [], []>} : vector<16x16xf32>, vector<16x128xf32>, vector<16x128xf32> -> vector<16x128xf32>
    %c0_12 = arith.constant 0 : index
    %c0_13 = arith.constant 0 : index
    %24 = vector.load %arg6[%c0_12, %c0_13] : memref<16x128xf32, #tpu.memory_space<vmem>>, vector<16x128xf32>
    tpu.vector_store %arg6[%c0_12, %c0_13], %23 {strides = array<i32>} : memref<16x128xf32, #tpu.memory_space<vmem>>, vector<16x128xf32>,
    %25 = arith.subf %21, %23 : vector<16x128xf32>
    %c0_14 = arith.constant 0 : index
    %c0_15 = arith.constant 0 : index
    %26 = vector.load %arg5[%c0_14, %c0_15] : memref<16x128xf32, #tpu.memory_space<vmem>>, vector<16x128xf32>
    tpu.vector_store %arg5[%c0_14, %c0_15], %25 {strides = array<i32>} : memref<16x128xf32, #tpu.memory_space<vmem>>, vector<16x128xf32>,
    return
  }
  func.func @transform_0(%arg0: i32) -> (i32, i32) {
    %c0_i32 = arith.constant 0 : i32
    %c0_i32_0 = arith.constant 0 : i32
    return %c0_i32, %arg0 : i32, i32
  }
  func.func @transform_1(%arg0: i32) -> (i32, i32) {
    %c0_i32 = arith.constant 0 : i32
    %c0_i32_0 = arith.constant 0 : i32
    %c0_i32_1 = arith.constant 0 : i32
    return %c0_i32, %c0_i32_0 : i32, i32
  }
  func.func @transform_2(%arg0: i32) -> (i32, i32) {
    %c0_i32 = arith.constant 0 : i32
    %c0_i32_0 = arith.constant 0 : i32
    return %c0_i32, %arg0 : i32, i32
  }
  func.func @transform_3(%arg0: i32) -> (i32, i32) {
    %c0_i32 = arith.constant 0 : i32
    %c0_i32_0 = arith.constant 0 : i32
    return %c0_i32, %arg0 : i32, i32
  }
  func.func @transform_4(%arg0: i32) -> (i32, i32) {
    %c0_i32 = arith.constant 0 : i32
    %c0_i32_0 = arith.constant 0 : i32
    return %c0_i32, %arg0 : i32, i32
  }
  func.func @transform_5(%arg0: i32) -> (i32, i32) {
    %c0_i32 = arith.constant 0 : i32
    %c0_i32_0 = arith.constant 0 : i32
    return %c0_i32, %arg0 : i32, i32
  }
}

module attributes {stable_mosaic.version = 11 : i64} {
  func.func @_revin_hp_kernel(%arg0: i32, %arg1: memref<16x128xf32, #tpu.memory_space<vmem>>, %arg2: memref<16x16xf32, #tpu.memory_space<vmem>>, %arg3: memref<1x128xf32, #tpu.memory_space<vmem>>, %arg4: memref<1x128xf32, #tpu.memory_space<vmem>>, %arg5: memref<16x128xf32, #tpu.memory_space<vmem>>, %arg6: memref<16x128xf32, #tpu.memory_space<vmem>>) attributes {dimension_semantics = [#tpu.dimension_semantics<parallel>], iteration_bounds = array<i64: 1>, scalar_prefetch = 0 : i64, scratch_operands = 0 : i64, tpu.core_type = #tpu.core_type<tc>, window_params = [{transform_indices = @transform_0, window_bounds = array<i64: 16, 128>}, {pipeline_mode = #tpu.pipeline_mode<synchronous>, transform_indices = @transform_1, window_bounds = array<i64: 16, 16>}, {transform_indices = @transform_2, window_bounds = array<i64: 1, 128>}, {transform_indices = @transform_3, window_bounds = array<i64: 1, 128>}, {transform_indices = @transform_4, window_bounds = array<i64: 16, 128>}, {transform_indices = @transform_5, window_bounds = array<i64: 16, 128>}]} {
    %c0 = arith.constant 0 : index
    %c0_0 = arith.constant 0 : index
    %0 = vector.load %arg1[%c0, %c0_0] : memref<16x128xf32, #tpu.memory_space<vmem>>, vector<16x128xf32>
    %cst = arith.constant dense<0.000000e+00> : vector<128xf32>
    %1 = vector.multi_reduction <add>, %0, %cst [0] : vector<16x128xf32> to vector<128xf32>
    %2 = vector.shape_cast %1 : vector<128xf32> to vector<1x128xf32>
    %cst_1 = arith.constant 1.600000e+01 : f32
    %3 = vector.broadcast %cst_1 : f32 to vector<1x128xf32>
    %4 = arith.divf %2, %3 : vector<1x128xf32>
    %5 = vector.broadcast %4 : vector<1x128xf32> to vector<16x128xf32>
    %6 = arith.subf %0, %5 : vector<16x128xf32>
    %7 = arith.mulf %6, %6 : vector<16x128xf32>
    %cst_2 = arith.constant dense<0.000000e+00> : vector<128xf32>
    %8 = vector.multi_reduction <add>, %7, %cst_2 [0] : vector<16x128xf32> to vector<128xf32>
    %9 = vector.shape_cast %8 : vector<128xf32> to vector<1x128xf32>
    %cst_3 = arith.constant 1.600000e+01 : f32
    %10 = vector.broadcast %cst_3 : f32 to vector<1x128xf32>
    %11 = arith.divf %9, %10 : vector<1x128xf32>
    %c0_4 = arith.constant 0 : index
    %c0_5 = arith.constant 0 : index
    %12 = vector.load %arg3[%c0_4, %c0_5] : memref<1x128xf32, #tpu.memory_space<vmem>>, vector<1x128xf32>
    %cst_6 = arith.constant 9.99999974E-6 : f32
    %13 = vector.broadcast %cst_6 : f32 to vector<1x128xf32>
    %14 = arith.addf %11, %13 : vector<1x128xf32>
    %15 = math.rsqrt %14 : vector<1x128xf32>
    %16 = arith.mulf %12, %15 : vector<1x128xf32>
    %17 = vector.broadcast %16 : vector<1x128xf32> to vector<16x128xf32>
    %18 = arith.mulf %6, %17 : vector<16x128xf32>
    %c0_7 = arith.constant 0 : index
    %c0_8 = arith.constant 0 : index
    %19 = vector.load %arg4[%c0_7, %c0_8] : memref<1x128xf32, #tpu.memory_space<vmem>>, vector<1x128xf32>
    %20 = vector.broadcast %19 : vector<1x128xf32> to vector<16x128xf32>
    %21 = arith.addf %18, %20 : vector<16x128xf32>
    %c0_9 = arith.constant 0 : index
    %c0_10 = arith.constant 0 : index
    %22 = vector.load %arg2[%c0_9, %c0_10] : memref<16x16xf32, #tpu.memory_space<vmem>>, vector<16x16xf32>
    %cst_11 = arith.constant dense<0.000000e+00> : vector<16x128xf32>
    %23 = tpu.matmul %22, %21, %cst_11 {dimension_numbers = #tpu.dot_dimension_numbers<[1], [0], [0], [1], [0, 0, 1, 1], [], []>} : vector<16x16xf32>, vector<16x128xf32>, vector<16x128xf32> -> vector<16x128xf32>
    %c0_12 = arith.constant 0 : index
    %c0_13 = arith.constant 0 : index
    %24 = vector.load %arg6[%c0_12, %c0_13] : memref<16x128xf32, #tpu.memory_space<vmem>>, vector<16x128xf32>
    tpu.vector_store %arg6[%c0_12, %c0_13], %23 {strides = array<i32>} : memref<16x128xf32, #tpu.memory_space<vmem>>, vector<16x128xf32>,
    %25 = arith.subf %21, %23 : vector<16x128xf32>
    %c0_14 = arith.constant 0 : index
    %c0_15 = arith.constant 0 : index
    %26 = vector.load %arg5[%c0_14, %c0_15] : memref<16x128xf32, #tpu.memory_space<vmem>>, vector<16x128xf32>
    tpu.vector_store %arg5[%c0_14, %c0_15], %25 {strides = array<i32>} : memref<16x128xf32, #tpu.memory_space<vmem>>, vector<16x128xf32>,
    return
  }
  func.func @transform_0(%arg0: i32) -> (i32, i32) {
    %c0_i32 = arith.constant 0 : i32
    %c0_i32_0 = arith.constant 0 : i32
    return %c0_i32, %arg0 : i32, i32
  }
  func.func @transform_1(%arg0: i32) -> (i32, i32) {
    %c0_i32 = arith.constant 0 : i32
    %c0_i32_0 = arith.constant 0 : i32
    %c0_i32_1 = arith.constant 0 : i32
    return %c0_i32, %c0_i32_0 : i32, i32
  }
  func.func @transform_2(%arg0: i32) -> (i32, i32) {
    %c0_i32 = arith.constant 0 : i32
    %c0_i32_0 = arith.constant 0 : i32
    return %c0_i32, %arg0 : i32, i32
  }
  func.func @transform_3(%arg0: i32) -> (i32, i32) {
    %c0_i32 = arith.constant 0 : i32
    %c0_i32_0 = arith.constant 0 : i32
    return %c0_i32, %arg0 : i32, i32
  }
  func.func @transform_4(%arg0: i32) -> (i32, i32) {
    %c0_i32 = arith.constant 0 : i32
    %c0_i32_0 = arith.constant 0 : i32
    return %c0_i32, %arg0 : i32, i32
  }
  func.func @transform_5(%arg0: i32) -> (i32, i32) {
    %c0_i32 = arith.constant 0 : i32
    %c0_i32_0 = arith.constant 0 : i32
    return %c0_i32, %arg0 : i32, i32
  }
}

</mosaic_0001>

<llo_original>
// kernel: tpu_custom_call.1
$region0: #{tpu_custom_call.1}
  #allocation0 [shape = 'u32[]', space=smem, size = 0x4, offset = 0x4, fixed_abs, tag = 'smem constant byte address 0x4 - core index']
  #allocation1 [shape = 'u32[72,128]{1,0:T(1,128)}', space=vmem, size = 0x9000, scoped, tag = 'internal scratch']
  %s0 = inlined_call_operand.hbm [shape: f32[16,128], index: 0, kind: input, shape index: {}]
  %s1 = inlined_call_operand.hbm [shape: f32[16,16], index: 1, kind: input, shape index: {}]
  %s2 = inlined_call_operand.vmem [shape: f32[1,128], index: 2, kind: input, shape index: {}]
  %s3 = inlined_call_operand.vmem [shape: f32[1,128], index: 3, kind: input, shape index: {}]
  %s4 = inlined_call_operand.hbm [shape: f32[16,128], index: 4, kind: output, shape index: {0}]
  %s5 = inlined_call_operand.hbm [shape: f32[16,128], index: 5, kind: output, shape index: {1}]
  %6 = xla_tuple %s4, %s5
  %s7 = sld [smem:[#allocation0]]
  $region42: #{tpu_custom_call.1} parent=0
    _
  %s9 = ssub.s32 1, %s7
  %s10 = scalar_select 0, %s9, %s7
  $region1: #{tpu_custom_call.1} parent=0
    #allocation2 [shape = 'u8[8192]{0}', space=vmem, size = 0x2000, scoped, tag = 'input window, operand 0, single buffered']
    #allocation3 [shape = 's32[1]{0}', space=sflag, size = 0x4, scoped, tag = 'scoped memory for tpu_custom_call.1']
    #allocation4 [shape = 's32[1]{0}', space=sflag, size = 0x4, scoped, tag = 'scoped memory for tpu_custom_call.1']
    #allocation5 [shape = 'u8[8192]{0}', space=vmem, size = 0x2000, scoped, tag = 'input window, operand 1, single buffered']
    #allocation6 [shape = 's32[1]{0}', space=sflag, size = 0x4, scoped, tag = 'scoped memory for tpu_custom_call.1']
    #allocation7 [shape = 'u8[8192]{0}', space=vmem, size = 0x2000, scoped, tag = 'output window, operand 0, single buffered']
    #allocation8 [shape = 'u8[8192]{0}', space=vmem, size = 0x2000, scoped, tag = 'output window, operand 1, single buffered']
    #allocation9 [shape = 's32[1]{0}', space=sflag, size = 0x4, scoped, tag = 'scoped memory for tpu_custom_call.1']
    %11 = vsyncpa [#allocation3], 0
    %12 = vsyncpa [#allocation6], 0
    %13 = vsyncpa [#allocation4], 0
    %14 = vsyncpa [#allocation9], 0
    // Predicated region
    $region2: #{tpu_custom_call.1} parent=1 // pred_check
      _
    $region3: #{tpu_custom_call.1} parent=1 // pred_check_branch
      %16 = sbr.rel (0) target = $region5
    $region4: #{tpu_custom_call.1} parent=1 // pred_region
      %18 = vsyncadd [#allocation3], 0
      %s19 = sshll.u32 %s0, 4
      %s20 = int_to_ptr.hbm [resolvable:$true] %s19
      %s21 = sshll.u32 [#allocation2], 4
      %s22 = int_to_ptr.vmem [resolvable:$true] %s21
      %27 = dma.hbm_to_vmem [thread:$0]  %s20, 256, %s22, [#allocation3], 128, 128, 8
    $region5: #{tpu_custom_call.1} parent=1 // pred_fallthru
      _
    // Predicated region
    $region6: #{tpu_custom_call.1} parent=1 // pred_check
      _
    $region7: #{tpu_custom_call.1} parent=1 // pred_check_branch
      %29 = sbr.rel (0) target = $region9
    $region8: #{tpu_custom_call.1} parent=1 // pred_region
      %31 = vsyncadd [#allocation6], 0
      %s32 = sshll.u32 %s1, 4
      %s33 = int_to_ptr.hbm [resolvable:$true] %s32
      %s34 = sshll.u32 [#allocation5], 4
      %s35 = int_to_ptr.vmem [resolvable:$true] %s34
      %40 = dma.hbm_to_vmem [thread:$0]  %s33, 256, %s35, [#allocation6], 128, 128, 8
    $region9: #{tpu_custom_call.1} parent=1 // pred_fallthru
      _
    // Predicated region
    $region10: #{tpu_custom_call.1} parent=1 // pred_check
      _
    $region11: #{tpu_custom_call.1} parent=1 // pred_check_branch
      %42 = sbr.rel (0) target = $region13
    $region12: #{tpu_custom_call.1} parent=1 // pred_region
      _
    $region13: #{tpu_custom_call.1} parent=1 // pred_fallthru
      _
    // Predicated region
    $region14: #{tpu_custom_call.1} parent=1 // pred_check
      _
    $region15: #{tpu_custom_call.1} parent=1 // pred_check_branch
      %44 = sbr.rel (0) target = $region17
    $region16: #{tpu_custom_call.1} parent=1 // pred_region
      _
    $region17: #{tpu_custom_call.1} parent=1 // pred_fallthru
      _
    // Predicated region
    $region18: #{tpu_custom_call.1} parent=1 // pred_check
      _
    $region19: #{tpu_custom_call.1} parent=1 // pred_check_branch
      %46 = sbr.rel (0) target = $region21
    $region20: #{tpu_custom_call.1} parent=1 // pred_region
      %48 = dma.done [#allocation3], 256
    $region21: #{tpu_custom_call.1} parent=1 // pred_fallthru
      _
    // Predicated region
    $region22: #{tpu_custom_call.1} parent=1 // pred_check
      _
    $region23: #{tpu_custom_call.1} parent=1 // pred_check_branch
      %50 = sbr.rel (0) target = $region25
    $region24: #{tpu_custom_call.1} parent=1 // pred_region
      %52 = dma.done [#allocation6], 256
    $region25: #{tpu_custom_call.1} parent=1 // pred_fallthru
      _
    %v53 = vld [vmem:[#allocation2] sm:$0xff]
    %v54 = vld [vmem:[#allocation2 + $0x8] sm:$0xff]
    %v55 = vadd.f32 %v53, %v54
    %v56 = vrot.slane %v55, 4
    %v57 = vadd.f32 %v55, %v56
    %v58 = vrot.slane %v57, 2
    %v59 = vadd.f32 %v57, %v58
    %v60 = vrot.slane %v59, 1
    %v61 = vadd.f32 %v59, %v60
    %v62 = vrcp.pop 16.0
    %v63 = vmul.f32 16.0, %v62
    %v64 = vsub.f32 1.0, %v63
    %v65 = vmul.f32 %v62, %v64
    %v66 = vadd.f32 %v62, %v65
    %vm67 = vweird.f32 %v62
    %v68 = vsel %vm67, %v62, %v66
    %v69 = vmul.f32 %v61, %v68
    %v70 = vsub.f32 %v53, %v69
    %v71 = vsub.f32 %v54, %v69
    %v72 = vmul.f32 %v70, %v70
    %v73 = vmul.f32 %v71, %v71
    %v74 = vadd.f32 %v72, %v73
    %v75 = vrot.slane %v74, 4
    %v76 = vadd.f32 %v74, %v75
    %v77 = vrot.slane %v76, 2
    %v78 = vadd.f32 %v76, %v77
    %v79 = vrot.slane %v78, 1
    %v80 = vadd.f32 %v78, %v79
    %v81 = vmul.f32 %v80, %v68
    %v82 = vld [vmem:[%s2] sm:$0x1]
    %v83 = vadd.f32 %v81, 1e-05
    %v84 = vrsqrt.pop %v83
    %v85 = vmul.f32 %v84, %v83
    %v86 = vmul.f32 %v85, %v84
    %v87 = vmul.f32 0.5, %v86
    %v88 = vsub.f32 1.5, %v87
    %v89 = vmul.f32 %v84, %v88
    %vm90 = vweird.f32 %v83
    %vm91 = vweird.f32 %v84
    %vm92 = vmor %vm90, %vm91
    %v93 = vsel %vm92, %v84, %v89
    %v94 = vmul.f32 %v82, %v93
    %v96 = vperm.slane %v94, 0
    %v98 = vmul.f32 %v70, %v96
    %v99 = vmul.f32 %v71, %v96
    %v100 = vld [vmem:[%s3] sm:$0x1]
    %v102 = vperm.slane %v100, 0
    %v104 = vadd.f32 %v98, %v102
    %v105 = vadd.f32 %v99, %v102
    %v106 = vld [vmem:[#allocation5] sm:$0xff]
    %v107 = vld [vmem:[#allocation5 + $0x8] sm:$0xff]
    %vm108 = vcmask 130048
    %v110 = vsel %vm108, %v106, 0
    %v113 = vsel %vm108, %v107, 0
    %115 = vmatpush.msra.mxu0 0.0
    %116 = vmatpush.msra.mxu0 0.0
    %117 = vmatpush.msra.mxu0 0.0
    %118 = vmatpush.msra.mxu0 0.0
    %119 = vmatpush.msra.mxu0 0.0
    %120 = vmatpush.msra.mxu0 0.0
    %121 = vmatpush.msra.mxu0 0.0
    %122 = vmatpush.msra.mxu0 0.0
    %123 = vmatpush.msra.mxu0 0.0
    %124 = vmatpush.msra.mxu0 0.0
    %125 = vmatpush.msra.mxu0 0.0
    %126 = vmatpush.msra.mxu0 0.0
    %127 = vmatpush.msra.mxu0 0.0
    %128 = vmatpush.msra.mxu0 0.0
    %129 = vmatpush.msra.mxu0 %v105
    %130 = vmatpush.msra.mxu0 %v104
    %131 = vmatmul.f32.gmra.mxu0 %v110
    %v132 = vpop.f32.mrf.mxu0
    %v133 = vadd.f32 0.0, %v132
    %134 = vmatmul.f32.gmra.mxu0 %v113
    %v135 = vpop.f32.mrf.mxu0
    %v136 = vadd.f32 0.0, %v135
    %137 = vdwg.mxu0
    %138 = vst [vmem:[#allocation8] sm:$0xff] %v133
    %139 = vst [vmem:[#allocation8 + $0x8] sm:$0xff] %v136
    %v140 = vsub.f32 %v104, %v133
    %v141 = vsub.f32 %v105, %v136
    %142 = vst [vmem:[#allocation7] sm:$0xff] %v140
    %143 = vst [vmem:[#allocation7 + $0x8] sm:$0xff] %v141
    // Predicated region
    $region26: #{tpu_custom_call.1} parent=1 // pred_check
      _
    $region27: #{tpu_custom_call.1} parent=1 // pred_check_branch
      %145 = sbr.rel (0) target = $region29
    $region28: #{tpu_custom_call.1} parent=1 // pred_region
      %147 = vsyncadd [#allocation4], 0
      %s148 = sshll.u32 [#allocation7], 4
      %s149 = int_to_ptr.vmem [resolvable:$true] %s148
      %s150 = sshll.u32 %s4, 4
      %s151 = int_to_ptr.hbm [resolvable:$true] %s150
      %156 = dma.vmem_to_hbm [thread:$0]  %s149, 256, %s151, [#allocation4], 128, 128, 8
    $region29: #{tpu_custom_call.1} parent=1 // pred_fallthru
      _
    // Predicated region
    $region30: #{tpu_custom_call.1} parent=1 // pred_check
      _
    $region31: #{tpu_custom_call.1} parent=1 // pred_check_branch
      %158 = sbr.rel (0) target = $region33
    $region32: #{tpu_custom_call.1} parent=1 // pred_region
      %160 = vsyncadd [#allocation9], 0
      %s161 = sshll.u32 [#allocation8], 4
      %s162 = int_to_ptr.vmem [resolvable:$true] %s161
      %s163 = sshll.u32 %s5, 4
      %s164 = int_to_ptr.hbm [resolvable:$true] %s163
      %169 = dma.vmem_to_hbm [thread:$0]  %s162, 256, %s164, [#allocation9], 128, 128, 8
    $region33: #{tpu_custom_call.1} parent=1 // pred_fallthru
      _
    // Predicated region
    $region34: #{tpu_custom_call.1} parent=1 // pred_check
      _
    $region35: #{tpu_custom_call.1} parent=1 // pred_check_branch
      %171 = sbr.rel (0) target = $region37
    $region36: #{tpu_custom_call.1} parent=1 // pred_region
      %173 = dma.done [#allocation4], 256
    $region37: #{tpu_custom_call.1} parent=1 // pred_fallthru
      _
    // Predicated region
    $region38: #{tpu_custom_call.1} parent=1 // pred_check
      _
    $region39: #{tpu_custom_call.1} parent=1 // pred_check_branch
      %175 = sbr.rel (0) target = $region41
    $region40: #{tpu_custom_call.1} parent=1 // pred_region
      %177 = dma.done [#allocation9], 256
    $region41: #{tpu_custom_call.1} parent=1 // pred_fallthru
      _
    %178 = vsyncpa [#allocation3], 1
    %179 = vsyncpa [#allocation6], 1
    %180 = vsyncpa [#allocation4], 1
    %181 = vsyncpa [#allocation9], 1

// kernel: tpu_custom_call.1
$region0: #{tpu_custom_call.1}
  #allocation0 [shape = 'u32[]', space=smem, size = 0x4, offset = 0x4, fixed_abs, tag = 'smem constant byte address 0x4 - core index']
  #allocation1 [shape = 'u32[72,128]{1,0:T(1,128)}', space=vmem, size = 0x9000, scoped, tag = 'internal scratch']
  %s0 = inlined_call_operand.hbm [shape: f32[16,128], index: 0, kind: input, shape index: {}]
  %s1 = inlined_call_operand.hbm [shape: f32[16,16], index: 1, kind: input, shape index: {}]
  %s2 = inlined_call_operand.vmem [shape: f32[1,128], index: 2, kind: input, shape index: {}]
  %s3 = inlined_call_operand.vmem [shape: f32[1,128], index: 3, kind: input, shape index: {}]
  %s4 = inlined_call_operand.hbm [shape: f32[16,128], index: 4, kind: output, shape index: {0}]
  %s5 = inlined_call_operand.hbm [shape: f32[16,128], index: 5, kind: output, shape index: {1}]
  %6 = xla_tuple %s4, %s5
  %s7 = sld [smem:[#allocation0]]
  $region42: #{tpu_custom_call.1} parent=0
    _
  %s9 = ssub.s32 1, %s7
  %s10 = scalar_select 0, %s9, %s7
  $region1: #{tpu_custom_call.1} parent=0
    #allocation2 [shape = 'u8[8192]{0}', space=vmem, size = 0x2000, scoped, tag = 'input window, operand 0, single buffered']
    #allocation3 [shape = 's32[1]{0}', space=sflag, size = 0x4, scoped, tag = 'scoped memory for tpu_custom_call.1']
    #allocation4 [shape = 's32[1]{0}', space=sflag, size = 0x4, scoped, tag = 'scoped memory for tpu_custom_call.1']
    #allocation5 [shape = 'u8[8192]{0}', space=vmem, size = 0x2000, scoped, tag = 'input window, operand 1, single buffered']
    #allocation6 [shape = 's32[1]{0}', space=sflag, size = 0x4, scoped, tag = 'scoped memory for tpu_custom_call.1']
    #allocation7 [shape = 'u8[8192]{0}', space=vmem, size = 0x2000, scoped, tag = 'output window, operand 0, single buffered']
    #allocation8 [shape = 'u8[8192]{0}', space=vmem, size = 0x2000, scoped, tag = 'output window, operand 1, single buffered']
    #allocation9 [shape = 's32[1]{0}', space=sflag, size = 0x4, scoped, tag = 'scoped memory for tpu_custom_call.1']
    %11 = vsyncpa [#allocation3], 0
    %12 = vsyncpa [#allocation6], 0
    %13 = vsyncpa [#allocation4], 0
    %14 = vsyncpa [#allocation9], 0
    // Predicated region
    $region2: #{tpu_custom_call.1} parent=1 // pred_check
      _
    $region3: #{tpu_custom_call.1} parent=1 // pred_check_branch
      %16 = sbr.rel (0) target = $region5
    $region4: #{tpu_custom_call.1} parent=1 // pred_region
      %18 = vsyncadd [#allocation3], 0
      %s19 = sshll.u32 %s0, 4
      %s20 = int_to_ptr.hbm [resolvable:$true] %s19
      %s21 = sshll.u32 [#allocation2], 4
      %s22 = int_to_ptr.vmem [resolvable:$true] %s21
      %27 = dma.hbm_to_vmem [thread:$0]  %s20, 256, %s22, [#allocation3], 128, 128, 8
    $region5: #{tpu_custom_call.1} parent=1 // pred_fallthru
      _
    // Predicated region
    $region6: #{tpu_custom_call.1} parent=1 // pred_check
      _
    $region7: #{tpu_custom_call.1} parent=1 // pred_check_branch
      %29 = sbr.rel (0) target = $region9
    $region8: #{tpu_custom_call.1} parent=1 // pred_region
      %31 = vsyncadd [#allocation6], 0
      %s32 = sshll.u32 %s1, 4
      %s33 = int_to_ptr.hbm [resolvable:$true] %s32
      %s34 = sshll.u32 [#allocation5], 4
      %s35 = int_to_ptr.vmem [resolvable:$true] %s34
      %40 = dma.hbm_to_vmem [thread:$0]  %s33, 256, %s35, [#allocation6], 128, 128, 8
    $region9: #{tpu_custom_call.1} parent=1 // pred_fallthru
      _
    // Predicated region
    $region10: #{tpu_custom_call.1} parent=1 // pred_check
      _
    $region11: #{tpu_custom_call.1} parent=1 // pred_check_branch
      %42 = sbr.rel (0) target = $region13
    $region12: #{tpu_custom_call.1} parent=1 // pred_region
      _
    $region13: #{tpu_custom_call.1} parent=1 // pred_fallthru
      _
    // Predicated region
    $region14: #{tpu_custom_call.1} parent=1 // pred_check
      _
    $region15: #{tpu_custom_call.1} parent=1 // pred_check_branch
      %44 = sbr.rel (0) target = $region17
    $region16: #{tpu_custom_call.1} parent=1 // pred_region
      _
    $region17: #{tpu_custom_call.1} parent=1 // pred_fallthru
      _
    // Predicated region
    $region18: #{tpu_custom_call.1} parent=1 // pred_check
      _
    $region19: #{tpu_custom_call.1} parent=1 // pred_check_branch
      %46 = sbr.rel (0) target = $region21
    $region20: #{tpu_custom_call.1} parent=1 // pred_region
      %48 = dma.done [#allocation3], 256
    $region21: #{tpu_custom_call.1} parent=1 // pred_fallthru
      _
    // Predicated region
    $region22: #{tpu_custom_call.1} parent=1 // pred_check
      _
    $region23: #{tpu_custom_call.1} parent=1 // pred_check_branch
      %50 = sbr.rel (0) target = $region25
    $region24: #{tpu_custom_call.1} parent=1 // pred_region
      %52 = dma.done [#allocation6], 256
    $region25: #{tpu_custom_call.1} parent=1 // pred_fallthru
      _
    %v53 = vld [vmem:[#allocation2] sm:$0xff]
    %v54 = vld [vmem:[#allocation2 + $0x8] sm:$0xff]
    %v55 = vadd.f32 %v53, %v54
    %v56 = vrot.slane %v55, 4
    %v57 = vadd.f32 %v55, %v56
    %v58 = vrot.slane %v57, 2
    %v59 = vadd.f32 %v57, %v58
    %v60 = vrot.slane %v59, 1
    %v61 = vadd.f32 %v59, %v60
    %v62 = vrcp.pop 16.0
    %v63 = vmul.f32 16.0, %v62
    %v64 = vsub.f32 1.0, %v63
    %v65 = vmul.f32 %v62, %v64
    %v66 = vadd.f32 %v62, %v65
    %vm67 = vweird.f32 %v62
    %v68 = vsel %vm67, %v62, %v66
    %v69 = vmul.f32 %v61, %v68
    %v70 = vsub.f32 %v53, %v69
    %v71 = vsub.f32 %v54, %v69
    %v72 = vmul.f32 %v70, %v70
    %v73 = vmul.f32 %v71, %v71
    %v74 = vadd.f32 %v72, %v73
    %v75 = vrot.slane %v74, 4
    %v76 = vadd.f32 %v74, %v75
    %v77 = vrot.slane %v76, 2
    %v78 = vadd.f32 %v76, %v77
    %v79 = vrot.slane %v78, 1
    %v80 = vadd.f32 %v78, %v79
    %v81 = vmul.f32 %v80, %v68
    %v82 = vld [vmem:[%s2] sm:$0x1]
    %v83 = vadd.f32 %v81, 1e-05
    %v84 = vrsqrt.pop %v83
    %v85 = vmul.f32 %v84, %v83
    %v86 = vmul.f32 %v85, %v84
    %v87 = vmul.f32 0.5, %v86
    %v88 = vsub.f32 1.5, %v87
    %v89 = vmul.f32 %v84, %v88
    %vm90 = vweird.f32 %v83
    %vm91 = vweird.f32 %v84
    %vm92 = vmor %vm90, %vm91
    %v93 = vsel %vm92, %v84, %v89
    %v94 = vmul.f32 %v82, %v93
    %v96 = vperm.slane %v94, 0
    %v98 = vmul.f32 %v70, %v96
    %v99 = vmul.f32 %v71, %v96
    %v100 = vld [vmem:[%s3] sm:$0x1]
    %v102 = vperm.slane %v100, 0
    %v104 = vadd.f32 %v98, %v102
    %v105 = vadd.f32 %v99, %v102
    %v106 = vld [vmem:[#allocation5] sm:$0xff]
    %v107 = vld [vmem:[#allocation5 + $0x8] sm:$0xff]
    %vm108 = vcmask 130048
    %v110 = vsel %vm108, %v106, 0
    %v113 = vsel %vm108, %v107, 0
    %115 = vmatpush.msra.mxu0 0.0
    %116 = vmatpush.msra.mxu0 0.0
    %117 = vmatpush.msra.mxu0 0.0
    %118 = vmatpush.msra.mxu0 0.0
    %119 = vmatpush.msra.mxu0 0.0
    %120 = vmatpush.msra.mxu0 0.0
    %121 = vmatpush.msra.mxu0 0.0
    %122 = vmatpush.msra.mxu0 0.0
    %123 = vmatpush.msra.mxu0 0.0
    %124 = vmatpush.msra.mxu0 0.0
    %125 = vmatpush.msra.mxu0 0.0
    %126 = vmatpush.msra.mxu0 0.0
    %127 = vmatpush.msra.mxu0 0.0
    %128 = vmatpush.msra.mxu0 0.0
    %129 = vmatpush.msra.mxu0 %v105
    %130 = vmatpush.msra.mxu0 %v104
    %131 = vmatmul.f32.gmra.mxu0 %v110
    %v132 = vpop.f32.mrf.mxu0
    %v133 = vadd.f32 0.0, %v132
    %134 = vmatmul.f32.gmra.mxu0 %v113
    %v135 = vpop.f32.mrf.mxu0
    %v136 = vadd.f32 0.0, %v135
    %137 = vdwg.mxu0
    %138 = vst [vmem:[#allocation8] sm:$0xff] %v133
    %139 = vst [vmem:[#allocation8 + $0x8] sm:$0xff] %v136
    %v140 = vsub.f32 %v104, %v133
    %v141 = vsub.f32 %v105, %v136
    %142 = vst [vmem:[#allocation7] sm:$0xff] %v140
    %143 = vst [vmem:[#allocation7 + $0x8] sm:$0xff] %v141
    // Predicated region
    $region26: #{tpu_custom_call.1} parent=1 // pred_check
      _
    $region27: #{tpu_custom_call.1} parent=1 // pred_check_branch
      %145 = sbr.rel (0) target = $region29
    $region28: #{tpu_custom_call.1} parent=1 // pred_region
      %147 = vsyncadd [#allocation4], 0
      %s148 = sshll.u32 [#allocation7], 4
      %s149 = int_to_ptr.vmem [resolvable:$true] %s148
      %s150 = sshll.u32 %s4, 4
      %s151 = int_to_ptr.hbm [resolvable:$true] %s150
      %156 = dma.vmem_to_hbm [thread:$0]  %s149, 256, %s151, [#allocation4], 128, 128, 8
    $region29: #{tpu_custom_call.1} parent=1 // pred_fallthru
      _
    // Predicated region
    $region30: #{tpu_custom_call.1} parent=1 // pred_check
      _
    $region31: #{tpu_custom_call.1} parent=1 // pred_check_branch
      %158 = sbr.rel (0) target = $region33
    $region32: #{tpu_custom_call.1} parent=1 // pred_region
      %160 = vsyncadd [#allocation9], 0
      %s161 = sshll.u32 [#allocation8], 4
      %s162 = int_to_ptr.vmem [resolvable:$true] %s161
      %s163 = sshll.u32 %s5, 4
      %s164 = int_to_ptr.hbm [resolvable:$true] %s163
      %169 = dma.vmem_to_hbm [thread:$0]  %s162, 256, %s164, [#allocation9], 128, 128, 8
    $region33: #{tpu_custom_call.1} parent=1 // pred_fallthru
      _
    // Predicated region
    $region34: #{tpu_custom_call.1} parent=1 // pred_check
      _
    $region35: #{tpu_custom_call.1} parent=1 // pred_check_branch
      %171 = sbr.rel (0) target = $region37
    $region36: #{tpu_custom_call.1} parent=1 // pred_region
      %173 = dma.done [#allocation4], 256
    $region37: #{tpu_custom_call.1} parent=1 // pred_fallthru
      _
    // Predicated region
    $region38: #{tpu_custom_call.1} parent=1 // pred_check
      _
    $region39: #{tpu_custom_call.1} parent=1 // pred_check_branch
      %175 = sbr.rel (0) target = $region41
    $region40: #{tpu_custom_call.1} parent=1 // pred_region
      %177 = dma.done [#allocation9], 256
    $region41: #{tpu_custom_call.1} parent=1 // pred_fallthru
      _
    %178 = vsyncpa [#allocation3], 1
    %179 = vsyncpa [#allocation6], 1
    %180 = vsyncpa [#allocation4], 1
    %181 = vsyncpa [#allocation9], 1

</llo_original>
